<compile_context>
chip_gen: v7x
topology: tpu7x:2x2x1
jax: 0.10.0
libtpu: 0.0.40
codegen_flags: <defaults>
</compile_context>

<pallas_src>
import jax
import jax.numpy as jnp
from jax import lax
from jax.experimental import pallas as pl
from jax.experimental.pallas import tpu as pltpu

LN_EPS = 1e-5  # nn.LayerNorm default eps


def mean_pooling_kernel(x_ref, m_ref, cnt_ref, gamma_ref, beta_ref, w_ref, b_ref,
                        out_ref, acc_ref):
    # x_ref:     (TB, TS, H)  VMEM, stored dtype (bf16/f32); ragged tails undefined
    # m_ref:     (TB, TS, 1)  VMEM f32, zero-padded attention-mask tile (defines validity)
    # cnt_ref:   (TB, 1, 1)   VMEM f32, per-row token count (hoisted to wrapper)
    # gamma_ref: (1, 1, H)    VMEM f32  LayerNorm weight
    # beta_ref:  (1, 1, H)    VMEM f32  LayerNorm bias
    # w_ref:     (1, 1, H)    VMEM f32  Linear weight (out_features=1)
    # b_ref:     (1, 1)       SMEM f32  Linear bias
    # out_ref:   (TB, 1, 1)   VMEM f32  logits (written once, in the epilogue)
    # acc_ref:   (TB, 1, H)   VMEM f32 scratch -- masked sum over seq
    k = pl.program_id(1)

    @pl.when(k == 0)
    def _init():
        acc_ref[...] = jnp.zeros_like(acc_ref)

    # VPU-path masked reduction over the seq axis, f32 accumulation.
    # jnp.where (not bare multiply) so undefined data in ragged tail tiles of x
    # (where the padded mask is 0) can never leak NaN/Inf into the accumulator.
    xf = x_ref[...].astype(jnp.float32)                 # (TB, TS, H)
    m = m_ref[...]                                      # (TB, TS, 1)
    contrib = jnp.where(m > 0.0, xf * m, 0.0)           # faithful to x * mask for valid tokens
    acc_ref[...] += jnp.sum(contrib, axis=1, keepdims=True)

    # Epilogue: mean -> LayerNorm -> Linear(H -> 1) + bias, only on the last seq step.
    @pl.when(k == pl.num_programs(1) - 1)
    def _epilogue():
        cnt = jnp.maximum(cnt_ref[...], 1e-9)                      # clamp(min=1e-9), (TB,1,1)
        # Per-row uniform scale -> LayerNorm is invariant to the approx-reciprocal error.
        mean = acc_ref[...] * pl.reciprocal(cnt, approx=True)      # (TB, 1, H)
        mu = jnp.mean(mean, axis=-1, keepdims=True)
        var = jnp.mean(jnp.square(mean - mu), axis=-1, keepdims=True)
        normed = (mean - mu) * lax.rsqrt(var + LN_EPS)
        normed = normed * gamma_ref[...] + beta_ref[...]           # (TB, 1, H)
        logits = jnp.sum(normed * w_ref[...], axis=-1, keepdims=True) + b_ref[0, 0]
        out_ref[...] = logits                                      # (TB, 1, 1)


def _select_tiling(B, S, H, itemsize, tb, ts, vmem_limit_bytes):
    """Generation-aware tile / VMEM-budget selection."""
    try:
        kind = jax.devices()[0].device_kind.lower()
    except Exception:
        kind = ""
    is_v7 = ("v7" in kind) or ("7x" in kind)

    if vmem_limit_bytes is None:
        # v7x has only 64 MiB physical VMEM/TC: leave headroom for Mosaic internal scratch.
        vmem_limit_bytes = (48 if is_v7 else 96) * 1024 * 1024
    if tb is None:
        tb = 8 if is_v7 else 16
    if ts is None:
        ts = 512 if is_v7 else 1024

    TB = B if B <= tb else tb
    # v7x megacore: both TensorCores only get work if the parallel batch axis has >= 2 tiles.
    if is_v7 and B > 1 and pl.cdiv(B, TB) < 2:
        TB = pl.cdiv(B, 2)

    TS = S if S <= ts else ts

    # Fit double-buffered x + mask tiles inside ~70% of the scoped-VMEM budget.
    budget = int(0.7 * vmem_limit_bytes)

    def tile_bytes(tb_, ts_):
        return 2 * tb_ * ts_ * (H * itemsize + 4)

    while tile_bytes(TB, TS) > budget and TS > 128 and (TS // 2) % 8 == 0:
        TS //= 2
    while tile_bytes(TB, TS) > budget and TB > 1:
        TB = max(1, TB // 2)

    return TB, TS, int(vmem_limit_bytes)


def mean_pooling(last_hidden_state, attention_mask, ln_weight, ln_bias,
                 lin_weight, lin_bias, *, tb=None, ts=None, vmem_limit_bytes=None):
    """Masked mean over seq -> LayerNorm -> Linear(H,1). Returns f32 logits of shape (B,)."""
    B, S, H = last_hidden_state.shape
    itemsize = jnp.dtype(last_hidden_state.dtype).itemsize
    TB, TS, vmem_limit_bytes = _select_tiling(B, S, H, itemsize, tb, ts, vmem_limit_bytes)

    nb = pl.cdiv(B, TB)
    nk = pl.cdiv(S, TS)
    Bp = nb * TB
    Sp = nk * TS

    # Only the tiny (B, S) mask and (B,) count get padded; x is consumed in place
    # (ragged tail tiles are suppressed in-kernel via the zero-padded mask).
    mask_f = attention_mask.astype(jnp.float32)
    cnt = jnp.sum(mask_f, axis=1)                                   # (B,)
    mask_p = jnp.pad(mask_f, ((0, Bp - B), (0, Sp - S)))
    mask3 = mask_p[:, :, None]                                      # (Bp, Sp, 1)
    cnt3 = jnp.pad(cnt, (0, Bp - B)).reshape(Bp, 1, 1)              # (Bp, 1, 1)

    gamma = ln_weight.reshape(1, 1, H).astype(jnp.float32)
    beta = ln_bias.reshape(1, 1, H).astype(jnp.float32)
    w = lin_weight.reshape(1, 1, H).astype(jnp.float32)
    b = lin_bias.reshape(1, 1).astype(jnp.float32)

    out = pl.pallas_call(
        mean_pooling_kernel,
        out_shape=jax.ShapeDtypeStruct((Bp, 1, 1), jnp.float32),
        grid_spec=pltpu.PrefetchScalarGridSpec(
            num_scalar_prefetch=0,
            grid=(nb, nk),
            in_specs=[
                pl.BlockSpec((TB, TS, H), lambda bi, ki: (bi, ki, 0)),   # x (unpadded)
                pl.BlockSpec((TB, TS, 1), lambda bi, ki: (bi, ki, 0)),   # mask (padded)
                pl.BlockSpec((TB, 1, 1), lambda bi, ki: (bi, 0, 0)),     # token counts
                pl.BlockSpec((1, 1, H), lambda bi, ki: (0, 0, 0)),       # LN gamma
                pl.BlockSpec((1, 1, H), lambda bi, ki: (0, 0, 0)),       # LN beta
                pl.BlockSpec((1, 1, H), lambda bi, ki: (0, 0, 0)),       # Linear weight
                pl.BlockSpec((1, 1), lambda bi, ki: (0, 0),
                             memory_space=pltpu.SMEM),                   # Linear bias
            ],
            out_specs=pl.BlockSpec((TB, 1, 1), lambda bi, ki: (bi, 0, 0)),
            scratch_shapes=[
                pltpu.VMEM((TB, 1, H), jnp.float32),   # masked-sum accumulator
            ],
        ),
        compiler_params=pltpu.CompilerParams(
            dimension_semantics=("parallel", "arbitrary"),
            vmem_limit_bytes=vmem_limit_bytes,
        ),
    )(last_hidden_state, mask3, cnt3, gamma, beta, w, b)

    return out[:B, 0, 0]  # squeeze -> (B,)


def reference_jax(x, mask, ln_w, ln_b, lin_w, lin_b):
    m_e = mask[:, :, None].astype(jnp.float32)
    xf = x.astype(jnp.float32)
    sum_emb = jnp.sum(xf * m_e, axis=1)
    sum_mask = jnp.maximum(jnp.sum(m_e, axis=1), 1e-9)
    mean_emb = sum_emb / sum_mask
    mu = jnp.mean(mean_emb, axis=-1, keepdims=True)
    var = jnp.mean(jnp.square(mean_emb - mu), axis=-1, keepdims=True)
    normed = (mean_emb - mu) * lax.rsqrt(var + LN_EPS) * ln_w + ln_b
    return jnp.sum(normed * lin_w, axis=-1) + lin_b[0]


if __name__ == "__main__":
    key = jax.random.PRNGKey(0)

    # --- small shapes consistent with the module ---
    B, S, H = 2, 8, 32
    k_x, k_m, k_w, key = jax.random.split(key, 4)
    x = jax.random.normal(k_x, (B, S, H), dtype=jnp.float32)
    mask = (jax.random.uniform(k_m, (B, S)) > 0.3).astype(jnp.float32)
    ln_w = jnp.ones((H,), jnp.float32)
    ln_b = jnp.zeros((H,), jnp.float32)
    bound = 1.0 / (H ** 0.5)
    lin_w = jax.random.uniform(k_w, (H,), minval=-bound, maxval=bound, dtype=jnp.float32)
    lin_b = jnp.full((1,), -1.0, jnp.float32)

    logits = mean_pooling(x, mask, ln_w, ln_b, lin_w, lin_b)
    jax.block_until_ready(logits)
    ref = reference_jax(x, mask, ln_w, ln_b, lin_w, lin_b)
    assert logits.shape == (B,)
    assert jnp.allclose(logits, ref, atol=1e-4, rtol=1e-4), (logits, ref)

    # --- ragged B and S (no padding of x): exercises in-kernel tail masking + accumulation ---
    B2, S2, H2 = 10, 200, 256
    k_x2, k_m2, k_w2, k_g2 = jax.random.split(key, 4)
    x2 = jax.random.normal(k_x2, (B2, S2, H2), dtype=jnp.float32)
    mask2 = (jax.random.uniform(k_m2, (B2, S2)) > 0.4).astype(jnp.float32)
    ln_w2 = 1.0 + 0.1 * jax.random.normal(k_g2, (H2,), dtype=jnp.float32)
    ln_b2 = 0.05 * jnp.arange(H2, dtype=jnp.float32) / H2
    bound2 = 1.0 / (H2 ** 0.5)
    lin_w2 = jax.random.uniform(k_w2, (H2,), minval=-bound2, maxval=bound2, dtype=jnp.float32)
    lin_b2 = jnp.full((1,), -1.0, jnp.float32)
    ref2 = reference_jax(x2, mask2, ln_w2, ln_b2, lin_w2, lin_b2)

    # forced small tiles: grid (2, 2), ragged tails in both batch and seq
    logits2 = mean_pooling(x2, mask2, ln_w2, ln_b2, lin_w2, lin_b2, tb=8, ts=128)
    jax.block_until_ready(logits2)
    assert logits2.shape == (B2,)
    assert jnp.allclose(logits2, ref2, atol=1e-4, rtol=1e-4), (logits2, ref2)

    # auto (generation-aware) tiling path
    logits3 = mean_pooling(x2, mask2, ln_w2, ln_b2, lin_w2, lin_b2)
    jax.block_until_ready(logits3)
    assert jnp.allclose(logits3, ref2, atol=1e-4, rtol=1e-4), (logits3, ref2)

    print("KERNEL_OK")
</pallas_src>

<mosaic_0001>
module attributes {stable_mosaic.version = 11 : i64} {
  func.func @mean_pooling_kernel(%arg0: i32, %arg1: i32, %arg2: memref<2x8x32xf32, #tpu.memory_space<vmem>>, %arg3: memref<2x8x1xf32, #tpu.memory_space<vmem>>, %arg4: memref<2x1x1xf32, #tpu.memory_space<vmem>>, %arg5: memref<1x1x32xf32, #tpu.memory_space<vmem>>, %arg6: memref<1x1x32xf32, #tpu.memory_space<vmem>>, %arg7: memref<1x1x32xf32, #tpu.memory_space<vmem>>, %arg8: memref<1x1xf32, #tpu.memory_space<smem>>, %arg9: memref<2x1x1xf32, #tpu.memory_space<vmem>>, %arg10: memref<2x1x32xf32, #tpu.memory_space<vmem>>) attributes {dimension_semantics = [#tpu.dimension_semantics<parallel>, #tpu.dimension_semantics<arbitrary>], iteration_bounds = array<i64: 1, 1>, scalar_prefetch = 0 : i64, scratch_operands = 1 : i64, tpu.core_type = #tpu.core_type<tc>, window_params = [{transform_indices = @transform_0, window_bounds = array<i64: 2, 8, 32>}, {transform_indices = @transform_1, window_bounds = array<i64: 2, 8, 1>}, {transform_indices = @transform_2, window_bounds = array<i64: 2, 1, 1>}, {pipeline_mode = #tpu.pipeline_mode<synchronous>, transform_indices = @transform_3, window_bounds = array<i64: 1, 1, 32>}, {pipeline_mode = #tpu.pipeline_mode<synchronous>, transform_indices = @transform_4, window_bounds = array<i64: 1, 1, 32>}, {pipeline_mode = #tpu.pipeline_mode<synchronous>, transform_indices = @transform_5, window_bounds = array<i64: 1, 1, 32>}, {transform_indices = @transform_6, window_bounds = array<i64: 1, 1>}, {transform_indices = @transform_7, window_bounds = array<i64: 2, 1, 1>}]} {
    %c0_i32 = arith.constant 0 : i32
    %0 = arith.cmpi eq, %arg1, %c0_i32 : i32
    %1 = arith.extui %0 : i1 to i32
    %c0_i32_0 = arith.constant 0 : i32
    %2 = arith.cmpi ne, %1, %c0_i32_0 : i32
    scf.if %2 {
      %cst_16 = arith.constant 0.000000e+00 : f32
      %21 = vector.broadcast %cst_16 : f32 to vector<2x1x32xf32>
      %c0_17 = arith.constant 0 : index
      %c0_18 = arith.constant 0 : index
      %c0_19 = arith.constant 0 : index
      %22 = vector.load %arg10[%c0_17, %c0_18, %c0_19] : memref<2x1x32xf32, #tpu.memory_space<vmem>>, vector<2x1x32xf32>
      tpu.vector_store %arg10[%c0_17, %c0_18, %c0_19], %21 {strides = array<i32>} : memref<2x1x32xf32, #tpu.memory_space<vmem>>, vector<2x1x32xf32>,
    } else {
    }
    %c0 = arith.constant 0 : index
    %c0_1 = arith.constant 0 : index
    %c0_2 = arith.constant 0 : index
    %3 = vector.load %arg2[%c0, %c0_1, %c0_2] : memref<2x8x32xf32, #tpu.memory_space<vmem>>, vector<2x8x32xf32>
    %c0_3 = arith.constant 0 : index
    %c0_4 = arith.constant 0 : index
    %c0_5 = arith.constant 0 : index
    %4 = vector.load %arg3[%c0_3, %c0_4, %c0_5] : memref<2x8x1xf32, #tpu.memory_space<vmem>>, vector<2x8x1xf32>
    %cst = arith.constant 0.000000e+00 : f32
    %5 = vector.broadcast %cst : f32 to vector<2x8x1xf32>
    %6 = arith.cmpf ogt, %4, %5 : vector<2x8x1xf32>
    %7 = vector.broadcast %4 : vector<2x8x1xf32> to vector<2x8x32xf32>
    %8 = arith.mulf %3, %7 : vector<2x8x32xf32>
    %cst_6 = arith.constant 0.000000e+00 : f32
    %9 = vector.shape_cast %6 : vector<2x8x1xi1> to vector<2x8x1xi1>
    %10 = vector.broadcast %9 : vector<2x8x1xi1> to vector<2x8x32xi1>
    %11 = vector.broadcast %cst_6 : f32 to vector<2x8x32xf32>
    %12 = arith.select %10, %8, %11 : vector<2x8x32xi1>, vector<2x8x32xf32>
    %c0_7 = arith.constant 0 : index
    %c0_8 = arith.constant 0 : index
    %c0_9 = arith.constant 0 : index
    %13 = vector.load %arg10[%c0_7, %c0_8, %c0_9] : memref<2x1x32xf32, #tpu.memory_space<vmem>>, vector<2x1x32xf32>
    %cst_10 = arith.constant dense<0.000000e+00> : vector<2x32xf32>
    %14 = vector.multi_reduction <add>, %12, %cst_10 [1] : vector<2x8x32xf32> to vector<2x32xf32>
    %15 = vector.shape_cast %14 : vector<2x32xf32> to vector<2x1x32xf32>
    %16 = arith.addf %13, %15 : vector<2x1x32xf32>
    %c0_11 = arith.constant 0 : index
    %c0_12 = arith.constant 0 : index
    %c0_13 = arith.constant 0 : index
    %17 = vector.load %arg10[%c0_11, %c0_12, %c0_13] : memref<2x1x32xf32, #tpu.memory_space<vmem>>, vector<2x1x32xf32>
    tpu.vector_store %arg10[%c0_11, %c0_12, %c0_13], %16 {strides = array<i32>} : memref<2x1x32xf32, #tpu.memory_space<vmem>>, vector<2x1x32xf32>,
    %c0_i32_14 = arith.constant 0 : i32
    %18 = arith.cmpi eq, %arg1, %c0_i32_14 : i32
    %19 = arith.extui %18 : i1 to i32
    %c0_i32_15 = arith.constant 0 : i32
    %20 = arith.cmpi ne, %19, %c0_i32_15 : i32
    scf.if %20 {
      %c0_16 = arith.constant 0 : index
      %c0_17 = arith.constant 0 : index
      %c0_18 = arith.constant 0 : index
      %21 = vector.load %arg4[%c0_16, %c0_17, %c0_18] : memref<2x1x1xf32, #tpu.memory_space<vmem>>, vector<2x1x1xf32>
      %cst_19 = arith.constant 9.99999971E-10 : f32
      %22 = vector.broadcast %cst_19 : f32 to vector<2x1x1xf32>
      %23 = arith.maximumf %21, %22 : vector<2x1x1xf32>
      %c0_20 = arith.constant 0 : index
      %c0_21 = arith.constant 0 : index
      %c0_22 = arith.constant 0 : index
      %24 = vector.load %arg10[%c0_20, %c0_21, %c0_22] : memref<2x1x32xf32, #tpu.memory_space<vmem>>, vector<2x1x32xf32>
      %25 = tpu.reciprocal %23 {approx = true} : vector<2x1x1xf32> -> vector<2x1x1xf32>
      %26 = vector.broadcast %25 : vector<2x1x1xf32> to vector<2x1x32xf32>
      %27 = arith.mulf %24, %26 : vector<2x1x32xf32>
      %cst_23 = arith.constant dense<0.000000e+00> : vector<2x1xf32>
      %28 = vector.multi_reduction <add>, %27, %cst_23 [2] : vector<2x1x32xf32> to vector<2x1xf32>
      %29 = vector.shape_cast %28 : vector<2x1xf32> to vector<2x1x1xf32>
      %cst_24 = arith.constant 3.200000e+01 : f32
      %30 = vector.broadcast %cst_24 : f32 to vector<2x1x1xf32>
      %31 = arith.divf %29, %30 : vector<2x1x1xf32>
      %32 = vector.broadcast %31 : vector<2x1x1xf32> to vector<2x1x32xf32>
      %33 = arith.subf %27, %32 : vector<2x1x32xf32>
      %34 = arith.mulf %33, %33 : vector<2x1x32xf32>
      %cst_25 = arith.constant dense<0.000000e+00> : vector<2x1xf32>
      %35 = vector.multi_reduction <add>, %34, %cst_25 [2] : vector<2x1x32xf32> to vector<2x1xf32>
      %36 = vector.shape_cast %35 : vector<2x1xf32> to vector<2x1x1xf32>
      %cst_26 = arith.constant 3.200000e+01 : f32
      %37 = vector.broadcast %cst_26 : f32 to vector<2x1x1xf32>
      %38 = arith.divf %36, %37 : vector<2x1x1xf32>
      %39 = vector.broadcast %31 : vector<2x1x1xf32> to vector<2x1x32xf32>
      %40 = arith.subf %27, %39 : vector<2x1x32xf32>
      %cst_27 = arith.constant 9.99999974E-6 : f32
      %41 = vector.broadcast %cst_27 : f32 to vector<2x1x1xf32>
      %42 = arith.addf %38, %41 : vector<2x1x1xf32>
      %43 = math.rsqrt %42 : vector<2x1x1xf32>
      %44 = vector.broadcast %43 : vector<2x1x1xf32> to vector<2x1x32xf32>
      %45 = arith.mulf %40, %44 : vector<2x1x32xf32>
      %c0_28 = arith.constant 0 : index
      %c0_29 = arith.constant 0 : index
      %c0_30 = arith.constant 0 : index
      %46 = vector.load %arg5[%c0_28, %c0_29, %c0_30] : memref<1x1x32xf32, #tpu.memory_space<vmem>>, vector<1x1x32xf32>
      %47 = vector.broadcast %46 : vector<1x1x32xf32> to vector<2x1x32xf32>
      %48 = arith.mulf %45, %47 : vector<2x1x32xf32>
      %c0_31 = arith.constant 0 : index
      %c0_32 = arith.constant 0 : index
      %c0_33 = arith.constant 0 : index
      %49 = vector.load %arg6[%c0_31, %c0_32, %c0_33] : memref<1x1x32xf32, #tpu.memory_space<vmem>>, vector<1x1x32xf32>
      %50 = vector.broadcast %49 : vector<1x1x32xf32> to vector<2x1x32xf32>
      %51 = arith.addf %48, %50 : vector<2x1x32xf32>
      %c0_34 = arith.constant 0 : index
      %c0_35 = arith.constant 0 : index
      %c0_36 = arith.constant 0 : index
      %52 = vector.load %arg7[%c0_34, %c0_35, %c0_36] : memref<1x1x32xf32, #tpu.memory_space<vmem>>, vector<1x1x32xf32>
      %53 = vector.broadcast %52 : vector<1x1x32xf32> to vector<2x1x32xf32>
      %54 = arith.mulf %51, %53 : vector<2x1x32xf32>
      %cst_37 = arith.constant dense<0.000000e+00> : vector<2x1xf32>
      %55 = vector.multi_reduction <add>, %54, %cst_37 [2] : vector<2x1x32xf32> to vector<2x1xf32>
      %56 = vector.shape_cast %55 : vector<2x1xf32> to vector<2x1x1xf32>
      %c0_38 = arith.constant 0 : index
      %c0_39 = arith.constant 0 : index
      %57 = memref.load %arg8[%c0_38, %c0_39] : memref<1x1xf32, #tpu.memory_space<smem>>
      %58 = vector.broadcast %57 : f32 to vector<2x1x1xf32>
      %59 = arith.addf %56, %58 : vector<2x1x1xf32>
      %c0_40 = arith.constant 0 : index
      %c0_41 = arith.constant 0 : index
      %c0_42 = arith.constant 0 : index
      %60 = vector.load %arg9[%c0_40, %c0_41, %c0_42] : memref<2x1x1xf32, #tpu.memory_space<vmem>>, vector<2x1x1xf32>
      tpu.vector_store %arg9[%c0_40, %c0_41, %c0_42], %59 {strides = array<i32>} : memref<2x1x1xf32, #tpu.memory_space<vmem>>, vector<2x1x1xf32>,
    } else {
    }
    return
  }
  func.func @transform_0(%arg0: i32, %arg1: i32) -> (i32, i32, i32) {
    %c0_i32 = arith.constant 0 : i32
    %c0_i32_0 = arith.constant 0 : i32
    return %arg0, %arg1, %c0_i32 : i32, i32, i32
  }
  func.func @transform_1(%arg0: i32, %arg1: i32) -> (i32, i32, i32) {
    %c0_i32 = arith.constant 0 : i32
    %c0_i32_0 = arith.constant 0 : i32
    return %arg0, %arg1, %c0_i32 : i32, i32, i32
  }
  func.func @transform_2(%arg0: i32, %arg1: i32) -> (i32, i32, i32) {
    %c0_i32 = arith.constant 0 : i32
    %c0_i32_0 = arith.constant 0 : i32
    %c0_i32_1 = arith.constant 0 : i32
    return %arg0, %c0_i32, %c0_i32_0 : i32, i32, i32
  }
  func.func @transform_3(%arg0: i32, %arg1: i32) -> (i32, i32, i32) {
    %c0_i32 = arith.constant 0 : i32
    %c0_i32_0 = arith.constant 0 : i32
    %c0_i32_1 = arith.constant 0 : i32
    %c0_i32_2 = arith.constant 0 : i32
    return %c0_i32, %c0_i32_0, %c0_i32_1 : i32, i32, i32
  }
  func.func @transform_4(%arg0: i32, %arg1: i32) -> (i32, i32, i32) {
    %c0_i32 = arith.constant 0 : i32
    %c0_i32_0 = arith.constant 0 : i32
    %c0_i32_1 = arith.constant 0 : i32
    %c0_i32_2 = arith.constant 0 : i32
    return %c0_i32, %c0_i32_0, %c0_i32_1 : i32, i32, i32
  }
  func.func @transform_5(%arg0: i32, %arg1: i32) -> (i32, i32, i32) {
    %c0_i32 = arith.constant 0 : i32
    %c0_i32_0 = arith.constant 0 : i32
    %c0_i32_1 = arith.constant 0 : i32
    %c0_i32_2 = arith.constant 0 : i32
    return %c0_i32, %c0_i32_0, %c0_i32_1 : i32, i32, i32
  }
  func.func @transform_6(%arg0: i32, %arg1: i32) -> (i32, i32) {
    %c0_i32 = arith.constant 0 : i32
    %c0_i32_0 = arith.constant 0 : i32
    %c0_i32_1 = arith.constant 0 : i32
    return %c0_i32, %c0_i32_0 : i32, i32
  }
  func.func @transform_7(%arg0: i32, %arg1: i32) -> (i32, i32, i32) {
    %c0_i32 = arith.constant 0 : i32
    %c0_i32_0 = arith.constant 0 : i32
    %c0_i32_1 = arith.constant 0 : i32
    return %arg0, %c0_i32, %c0_i32_0 : i32, i32, i32
  }
}

</mosaic_0001>

<llo_original>
// kernel: tpu_custom_call.1
$region0: #{tpu_custom_call.1}
  #allocation0 [shape = 'u32[]', space=smem, size = 0x4, offset = 0x4, fixed_abs, tag = 'smem constant byte address 0x4 - core index']
  #allocation1 [shape = 'u32[144,128]{1,0:T(1,128)}', space=vmem, size = 0x12000, scoped, tag = 'internal scratch']
  #allocation2 [shape = 'f32[2,1,32]{2,1,0:T(1,128)}', space=vmem, size = 0x400, scoped, tag = 'scratch operand']
  #allocation3 [shape = 'f32[1,1]{1,0:T(1,128)S(6)}', space=smem, size = 0x200, scoped, tag = 'scoped memory for tpu_custom_call.1']
  %s0 = inlined_call_operand.hbm [shape: f32[2,8,32], index: 0, kind: input, shape index: {}]
  %s1 = inlined_call_operand.hbm [shape: f32[2,8,1], index: 1, kind: input, shape index: {}]
  %s2 = inlined_call_operand.hbm [shape: f32[2,1,1], index: 2, kind: input, shape index: {}]
  %s3 = inlined_call_operand.hbm [shape: f32[1,1,32], index: 3, kind: input, shape index: {}]
  %s4 = inlined_call_operand.hbm [shape: f32[1,1,32], index: 4, kind: input, shape index: {}]
  %s5 = inlined_call_operand.hbm [shape: f32[1,1,32], index: 5, kind: input, shape index: {}]
  %s6 = inlined_call_operand.<no memory space> [shape: f32[1,1], index: 6, kind: input, shape index: {}]
  %s7 = inlined_call_operand.hbm [shape: f32[2,1,1], index: 7, kind: output, shape index: {}]
  %s8 = sld [smem:[#allocation0]]
  $region70: #{tpu_custom_call.1} parent=0
    _
  %s10 = ssub.s32 1, %s8
  %s11 = scalar_select 0, %s10, %s8
  %12 = sst [smem:[#allocation3]] %s6
  $region1: #{tpu_custom_call.1} parent=0
    #allocation4 [shape = 'u8[8192]{0}', space=vmem, size = 0x2000, scoped, tag = 'input window, operand 0, single buffered']
    #allocation5 [shape = 's32[1]{0}', space=sflag, size = 0x4, scoped, tag = 'scoped memory for tpu_custom_call.1']
    #allocation6 [shape = 's32[1]{0}', space=sflag, size = 0x4, scoped, tag = 'scoped memory for tpu_custom_call.1']
    #allocation7 [shape = 'u8[8192]{0}', space=vmem, size = 0x2000, scoped, tag = 'input window, operand 1, single buffered']
    #allocation8 [shape = 's32[1]{0}', space=sflag, size = 0x4, scoped, tag = 'scoped memory for tpu_custom_call.1']
    #allocation9 [shape = 'u8[1024]{0}', space=vmem, size = 0x400, scoped, tag = 'input window, operand 2, single buffered']
    #allocation10 [shape = 'u8[512]{0}', space=vmem, size = 0x400, scoped, tag = 'input window, operand 3, single buffered']
    #allocation11 [shape = 's32[1]{0}', space=sflag, size = 0x4, scoped, tag = 'scoped memory for tpu_custom_call.1']
    #allocation12 [shape = 'u8[512]{0}', space=vmem, size = 0x400, scoped, tag = 'input window, operand 4, single buffered']
    #allocation13 [shape = 'u8[512]{0}', space=vmem, size = 0x400, scoped, tag = 'input window, operand 5, single buffered']
    #allocation14 [shape = 's32[1]{0}', space=sflag, size = 0x4, scoped, tag = 'scoped memory for tpu_custom_call.1']
    #allocation15 [shape = 'u8[1024]{0}', space=vmem, size = 0x400, scoped, tag = 'output window, operand 0, single buffered']
    %13 = vsyncpa [#allocation5], 0
    %14 = vsyncpa [#allocation8], 0
    %15 = vsyncpa [#allocation11], 0
    %16 = vsyncpa [#allocation14], 0
    %17 = vsyncpa [#allocation6], 0
    // Predicated region
    $region2: #{tpu_custom_call.1} parent=1 // pred_check
      _
    $region3: #{tpu_custom_call.1} parent=1 // pred_check_branch
      %19 = sbr.rel (0) target = $region5
    $region4: #{tpu_custom_call.1} parent=1 // pred_region
      %s21 = ssub.s32 256, 256
      %22 = vsyncadd [#allocation5], %s21
      %s23 = sshll.u32 [#allocation4], 4
      %s24 = int_to_ptr.vmem [resolvable:$true] %s23
      %29 = dma.hbm_to_vmem [thread:$0]  %s0, 256, %s24, [#allocation5], 128, 128, 8
    $region5: #{tpu_custom_call.1} parent=1 // pred_fallthru
      _
    // Predicated region
    $region6: #{tpu_custom_call.1} parent=1 // pred_check
      _
    $region7: #{tpu_custom_call.1} parent=1 // pred_check_branch
      %31 = sbr.rel (0) target = $region9
    $region8: #{tpu_custom_call.1} parent=1 // pred_region
      %s33 = ssub.s32 256, 256
      %34 = vsyncadd [#allocation8], %s33
      %s35 = sshll.u32 [#allocation7], 4
      %s36 = int_to_ptr.vmem [resolvable:$true] %s35
      %41 = dma.hbm_to_vmem [thread:$0]  %s1, 256, %s36, [#allocation8], 128, 128, 8
    $region9: #{tpu_custom_call.1} parent=1 // pred_fallthru
      _
    // Predicated region
    $region10: #{tpu_custom_call.1} parent=1 // pred_check
      _
    $region11: #{tpu_custom_call.1} parent=1 // pred_check_branch
      %43 = sbr.rel (0) target = $region13
    $region12: #{tpu_custom_call.1} parent=1 // pred_region
      %s45 = ssub.s32 32, 32
      %46 = vsyncadd [#allocation8], %s45
      %s47 = sshll.u32 [#allocation9], 4
      %s48 = int_to_ptr.vmem [resolvable:$true] %s47
      %53 = dma.hbm_to_vmem [thread:$0]  %s2, 32, %s48, [#allocation8], 16, 16, 1
    $region13: #{tpu_custom_call.1} parent=1 // pred_fallthru
      _
    // Predicated region
    $region14: #{tpu_custom_call.1} parent=1 // pred_check
      _
    $region15: #{tpu_custom_call.1} parent=1 // pred_check_branch
      %55 = sbr.rel (0) target = $region17
    $region16: #{tpu_custom_call.1} parent=1 // pred_region
      %s57 = ssub.s32 16, 16
      %58 = vsyncadd [#allocation11], %s57
      %s60 = sshll.u32 [#allocation10], 4
      %s61 = int_to_ptr.vmem [resolvable:$true] %s60
      %63 = dma.hbm_to_vmem [thread:$0]  %s3, 16, %s61, [#allocation11]
    $region17: #{tpu_custom_call.1} parent=1 // pred_fallthru
      _
    // Predicated region
    $region18: #{tpu_custom_call.1} parent=1 // pred_check
      _
    $region19: #{tpu_custom_call.1} parent=1 // pred_check_branch
      %65 = sbr.rel (0) target = $region21
    $region20: #{tpu_custom_call.1} parent=1 // pred_region
      %s67 = ssub.s32 16, 16
      %68 = vsyncadd [#allocation11], %s67
      %s70 = sshll.u32 [#allocation12], 4
      %s71 = int_to_ptr.vmem [resolvable:$true] %s70
      %73 = dma.hbm_to_vmem [thread:$0]  %s4, 16, %s71, [#allocation11]
    $region21: #{tpu_custom_call.1} parent=1 // pred_fallthru
      _
    // Predicated region
    $region22: #{tpu_custom_call.1} parent=1 // pred_check
      _
    $region23: #{tpu_custom_call.1} parent=1 // pred_check_branch
      %75 = sbr.rel (0) target = $region25
    $region24: #{tpu_custom_call.1} parent=1 // pred_region
      %s77 = ssub.s32 16, 16
      %78 = vsyncadd [#allocation14], %s77
      %s80 = sshll.u32 [#allocation13], 4
      %s81 = int_to_ptr.vmem [resolvable:$true] %s80
      %83 = dma.hbm_to_vmem [thread:$0]  %s5, 16, %s81, [#allocation14]
    $region25: #{tpu_custom_call.1} parent=1 // pred_fallthru
      _
    // Predicated region
    $region26: #{tpu_custom_call.1} parent=1 // pred_check
      _
    $region27: #{tpu_custom_call.1} parent=1 // pred_check_branch
      %85 = sbr.rel (0) target = $region29
    $region28: #{tpu_custom_call.1} parent=1 // pred_region
      _
    $region29: #{tpu_custom_call.1} parent=1 // pred_fallthru
      _
    // Predicated region
    $region30: #{tpu_custom_call.1} parent=1 // pred_check
      _
    $region31: #{tpu_custom_call.1} parent=1 // pred_check_branch
      %87 = sbr.rel (0) target = $region33
    $region32: #{tpu_custom_call.1} parent=1 // pred_region
      %88 = dma.done [#allocation5], 256
    $region33: #{tpu_custom_call.1} parent=1 // pred_fallthru
      _
    // Predicated region
    $region34: #{tpu_custom_call.1} parent=1 // pred_check
      _
    $region35: #{tpu_custom_call.1} parent=1 // pred_check_branch
      %90 = sbr.rel (0) target = $region37
    $region36: #{tpu_custom_call.1} parent=1 // pred_region
      %91 = dma.done [#allocation8], 256
    $region37: #{tpu_custom_call.1} parent=1 // pred_fallthru
      _
    // Predicated region
    $region38: #{tpu_custom_call.1} parent=1 // pred_check
      _
    $region39: #{tpu_custom_call.1} parent=1 // pred_check_branch
      %93 = sbr.rel (0) target = $region41
    $region40: #{tpu_custom_call.1} parent=1 // pred_region
      %94 = dma.done [#allocation8], 32
    $region41: #{tpu_custom_call.1} parent=1 // pred_fallthru
      _
    // Predicated region
    $region42: #{tpu_custom_call.1} parent=1 // pred_check
      _
    $region43: #{tpu_custom_call.1} parent=1 // pred_check_branch
      %96 = sbr.rel (0) target = $region45
    $region44: #{tpu_custom_call.1} parent=1 // pred_region
      %97 = dma.done [#allocation11], 16
    $region45: #{tpu_custom_call.1} parent=1 // pred_fallthru
      _
    // Predicated region
    $region46: #{tpu_custom_call.1} parent=1 // pred_check
      _
    $region47: #{tpu_custom_call.1} parent=1 // pred_check_branch
      %99 = sbr.rel (0) target = $region49
    $region48: #{tpu_custom_call.1} parent=1 // pred_region
      %100 = dma.done [#allocation11], 16
    $region49: #{tpu_custom_call.1} parent=1 // pred_fallthru
      _
    // Predicated region
    $region50: #{tpu_custom_call.1} parent=1 // pred_check
      _
    $region51: #{tpu_custom_call.1} parent=1 // pred_check_branch
      %102 = sbr.rel (0) target = $region53
    $region52: #{tpu_custom_call.1} parent=1 // pred_region
      %103 = dma.done [#allocation14], 16
    $region53: #{tpu_custom_call.1} parent=1 // pred_fallthru
      _
    %p104 = scmp.eq.s32.totalorder 0, 0
    // Predicated region
    $region54: #{tpu_custom_call.1} parent=1 // pred_check
      %p105 = pneg %p104
    $region55: #{tpu_custom_call.1} parent=1 // pred_check_branch
      %107 = sbr.rel (%p105) target = $region57
    $region56: #{tpu_custom_call.1} parent=1 // pred_region
      %vm108 = vcmask 253952
      %109 = vst.msk [vmem:[#allocation2] sm:$0x1] %vm108, 0.0
      %110 = vst.msk [vmem:[#allocation2 + $0x1] sm:$0x1] %vm108, 0.0
    $region57: #{tpu_custom_call.1} parent=1 // pred_fallthru
      _
    %v111 = vld [vmem:[#allocation4] sm:$0xff]
    %v112 = vld [vmem:[#allocation4 + $0x8] sm:$0xff]
    %v113 = vld [vmem:[#allocation7] sm:$0xff]
    %v114 = vld [vmem:[#allocation7 + $0x8] sm:$0xff]
    %vm115 = vcmp.gt.f32.partialorder %v113, 0.0
    %vm116 = vcmp.gt.f32.partialorder %v114, 0.0
    %118 = vset.pattern.permute.xlu0 0
    %119 = vperm.xlu0 %118, %v113
    %v120 = vpop.permute.xlu0 %119
    %123 = vset.pattern.permute.xlu0 0
    %124 = vperm.xlu0 %123, %v114
    %v125 = vpop.permute.xlu0 %124
    %v127 = vmul.f32 %v111, %v120
    %v128 = vmul.f32 %v112, %v125
    %v129 = vsel %vm115, 1, 0
    %v130 = vsel %vm116, 1, 0
    %131 = vset.pattern.permute.xlu0 0
    %132 = vperm.xlu0 %131, %v129
    %v133 = vpop.permute.xlu0 %132
    %134 = vset.pattern.permute.xlu0 0
    %135 = vperm.xlu0 %134, %v130
    %v136 = vpop.permute.xlu0 %135
    %vm137 = vcmp.eq.s32.totalorder %v133, 1
    %vm138 = vcmp.eq.s32.totalorder %v136, 1
    %v139 = vsel %vm137, %v127, 0.0
    %v140 = vsel %vm138, %v128, 0.0
    %v141 = vld [vmem:[#allocation2] sm:$0x1]
    %v142 = vld [vmem:[#allocation2 + $0x1] sm:$0x1]
    %vm143 = vcmask 261120
    %v144 = vsel %vm143, %v139, 0.0
    %v145 = vrot.slane %v144, 4
    %v146 = vadd.f32 %v144, %v145
    %v147 = vrot.slane %v146, 2
    %v148 = vadd.f32 %v146, %v147
    %v149 = vrot.slane %v148, 1
    %v150 = vadd.f32 %v148, %v149
    %v151 = vsel %vm143, %v140, 0.0
    %v152 = vrot.slane %v151, 4
    %v153 = vadd.f32 %v151, %v152
    %v154 = vrot.slane %v153, 2
    %v155 = vadd.f32 %v153, %v154
    %v156 = vrot.slane %v155, 1
    %v157 = vadd.f32 %v155, %v156
    %v158 = vadd.f32 %v141, %v150
    %v159 = vadd.f32 %v142, %v157
    %vm160 = vcmask 253952
    %161 = vst.msk [vmem:[#allocation2] sm:$0x1] %vm160, %v158
    %162 = vst.msk [vmem:[#allocation2 + $0x1] sm:$0x1] %vm160, %v159
    // Predicated region
    $region58: #{tpu_custom_call.1} parent=1 // pred_check
      %p163 = pneg %p104
    $region59: #{tpu_custom_call.1} parent=1 // pred_check_branch
      %165 = sbr.rel (%p163) target = $region61
    $region60: #{tpu_custom_call.1} parent=1 // pred_region
      %v166 = vld [vmem:[#allocation9] sm:$0x1]
      %v167 = vld [vmem:[#allocation9 + $0x1] sm:$0x1]
      %v168 = vmax.f32 %v166, 1e-09
      %v169 = vmax.f32 %v167, 1e-09
      %v170 = vld [vmem:[#allocation2] sm:$0x1]
      %v171 = vld [vmem:[#allocation2 + $0x1] sm:$0x1]
      %v172 = vrcp.pop %v168
      %v173 = vrcp.pop %v169
      %175 = vset.pattern.permute.xlu0 0
      %176 = vperm.xlu0 %175, %v172
      %v177 = vpop.permute.xlu0 %176
      %v179 = vlaneseq
      %v180 = vshrl.u32 %v179, 7
      %v181 = vsub.s32 0, %v180
      %v182 = vrot.slane %v177, %v181
      %184 = vset.pattern.permute.xlu0 0
      %185 = vperm.xlu0 %184, %v173
      %v186 = vpop.permute.xlu0 %185
      %v188 = vlaneseq
      %v189 = vshrl.u32 %v188, 7
      %v190 = vsub.s32 0, %v189
      %v191 = vrot.slane %v186, %v190
      %v192 = vmul.f32 %v170, %v182
      %v193 = vmul.f32 %v171, %v191
      %v194 = vsel %vm160, %v192, 0.0
      %195 = vadd.xlane.f32.xlu0 %v194
      %v196 = vpop.xlane.xlu0 %195
      %v197 = vsel %vm160, %v193, 0.0
      %198 = vadd.xlane.f32.xlu0 %v197
      %v199 = vpop.xlane.xlu0 %198
      %v200 = vrcp.pop 32.0
      %v201 = vmul.f32 %v196, %v200
      %v202 = vmul.f32 %v199, %v200
      %v203 = vsub.f32 %v192, %v201
      %v204 = vsub.f32 %v193, %v202
      %v205 = vmul.f32 %v203, %v203
      %v206 = vmul.f32 %v204, %v204
      %v207 = vsel %vm160, %v205, 0.0
      %208 = vadd.xlane.f32.xlu0 %v207
      %v209 = vpop.xlane.xlu0 %208
      %v210 = vsel %vm160, %v206, 0.0
      %211 = vadd.xlane.f32.xlu0 %v210
      %v212 = vpop.xlane.xlu0 %211
      %v213 = vmul.f32 %v209, %v200
      %v214 = vmul.f32 %v212, %v200
      %v215 = vadd.f32 %v213, 1e-05
      %v216 = vadd.f32 %v214, 1e-05
      %v217 = vrsqrt.pop %v215
      %v218 = vrsqrt.pop %v216
      %v219 = vmul.f32 %v203, %v217
      %v220 = vmul.f32 %v204, %v218
      %v221 = vld [vmem:[#allocation10] sm:$0x1]
      %v222 = vmul.f32 %v219, %v221
      %v223 = vmul.f32 %v220, %v221
      %v224 = vld [vmem:[#allocation12] sm:$0x1]
      %v225 = vadd.f32 %v222, %v224
      %v226 = vadd.f32 %v223, %v224
      %v227 = vld [vmem:[#allocation13] sm:$0x1]
      %v228 = vmul.f32 %v225, %v227
      %v229 = vmul.f32 %v226, %v227
      %v230 = vsel %vm160, %v228, 0.0
      %231 = vadd.xlane.f32.xlu0 %v230
      %v232 = vpop.xlane.xlu0 %231
      %v233 = vsel %vm160, %v229, 0.0
      %234 = vadd.xlane.f32.xlu0 %v233
      %v235 = vpop.xlane.xlu0 %234
      %s236 = sld [smem:[#allocation3]]
      %v237 = vstv %s236
      %v238 = vadd.f32 %v232, %v237
      %v239 = vadd.f32 %v235, %v237
      %vm240 = vcmask 0
      %241 = vst.msk [vmem:[#allocation15] sm:$0x1] %vm240, %v238
      %242 = vst.msk [vmem:[#allocation15 + $0x1] sm:$0x1] %vm240, %v239
    $region61: #{tpu_custom_call.1} parent=1 // pred_fallthru
      _
    // Predicated region
    $region62: #{tpu_custom_call.1} parent=1 // pred_check
      _
    $region63: #{tpu_custom_call.1} parent=1 // pred_check_branch
      %244 = sbr.rel (0) target = $region65
    $region64: #{tpu_custom_call.1} parent=1 // pred_region
      %s246 = ssub.s32 32, 32
      %247 = vsyncadd [#allocation6], %s246
      %s248 = sshll.u32 [#allocation15], 4
      %s249 = int_to_ptr.vmem [resolvable:$true] %s248
      %254 = dma.vmem_to_hbm [thread:$0]  %s249, 32, %s7, [#allocation6], 16, 16, 1
    $region65: #{tpu_custom_call.1} parent=1 // pred_fallthru
      _
    // Predicated region
    $region66: #{tpu_custom_call.1} parent=1 // pred_check
      _
    $region67: #{tpu_custom_call.1} parent=1 // pred_check_branch
      %256 = sbr.rel (0) target = $region69
    $region68: #{tpu_custom_call.1} parent=1 // pred_region
      %257 = dma.done [#allocation6], 32
    $region69: #{tpu_custom_call.1} parent=1 // pred_fallthru
      _
    %258 = vsyncpa [#allocation5], 1
    %259 = vsyncpa [#allocation8], 1
    %260 = vsyncpa [#allocation11], 1
    %261 = vsyncpa [#allocation14], 1
    %262 = vsyncpa [#allocation6], 1

</llo_original>
